<compile_context>
chip_gen: v7x
topology: tpu7x:2x2x1
jax: 0.10.0
libtpu: 0.0.40
codegen_flags: <defaults>
</compile_context>

<pallas_src>
import functools

import jax
import jax.numpy as jnp
from jax import lax
from jax.experimental import pallas as pl
from jax.experimental.pallas import tpu as pltpu

_SUBLANES = 8
_LANES = 128
_FAST_PATH_F32_BYTES = 2 * 1024 * 1024   # padded-f32 footprint for 1-step path
_TILE_TARGET_BYTES = 4 * 1024 * 1024     # per input tile (double-buffered)


def _round_up(x, m):
    return (x + m - 1) // m * m


# ---------------------------------------------------------------------------
# FAST path: single grid step, lane-dense (B, N*N) layout, in-kernel mean.
# ---------------------------------------------------------------------------
def _cos_loss_small_kernel(w_ref, sign_ref, out_ref, *, factor, havesum,
                           havemax, inv_b):
    w = w_ref[...].astype(jnp.float32)        # (B, N*N), lane-dense
    nw = w * sign_ref[...]                    # diag negation == mask * w
    need_max = havemax or (not havesum)
    tmp = jnp.max(nw, axis=1, keepdims=True) if need_max else None   # (B, 1)
    if havesum:
        s = jnp.sum(nw, axis=1, keepdims=True)                       # (B, 1)
        if havemax:
            tmp_all = tmp + jnp.float32(factor) * s
        else:
            tmp_all = jnp.float32(factor) * s
    else:
        tmp_all = tmp
    loss = jnp.sum(tmp_all, axis=0, keepdims=True) * jnp.float32(inv_b)  # (1,1)
    out_ref[...] = jnp.broadcast_to(loss, out_ref.shape)   # lane-dense slab


def _cos_loss_small(w, factor, havesum, havemax):
    B, N, _ = w.shape
    P = N * N
    w2 = w.reshape(B, P)                                   # free trailing merge
    p = jnp.arange(P, dtype=jnp.int32)
    sign = jnp.where(p % (N + 1) == 0, jnp.float32(-1.0),
                     jnp.float32(1.0)).reshape(1, P)       # diag at j*(N+1)

    kernel = functools.partial(_cos_loss_small_kernel, factor=factor,
                               havesum=havesum, havemax=havemax,
                               inv_b=1.0 / B)
    out = pl.pallas_call(
        kernel,
        out_shape=jax.ShapeDtypeStruct((_SUBLANES, _LANES), jnp.float32),
        grid=(1,),
        in_specs=[pl.BlockSpec((B, P), lambda i: (0, 0)),
                  pl.BlockSpec((1, P), lambda i: (0, 0))],
        out_specs=pl.BlockSpec((_SUBLANES, _LANES), lambda i: (0, 0)),
        compiler_params=pltpu.CompilerParams(
            dimension_semantics=("arbitrary",)),
    )(w2, sign)
    return out[0, 0]


# ---------------------------------------------------------------------------
# TILED path: (B, nr) grid, (8, N) vector accumulators, finalize reduce.
# ---------------------------------------------------------------------------
def _cos_loss_tiled_kernel(w_ref, out_ref, max_acc, sum_acc, *, n, row_tile,
                           factor, havesum, havemax, has_partial):
    r = pl.program_id(1)
    nr = pl.num_programs(1)
    need_max = havemax or (not havesum)
    need_sum = havesum
    fold8 = (row_tile % _SUBLANES) == 0

    @pl.when(r == 0)
    def _init():
        max_acc[...] = jnp.full(max_acc.shape, -jnp.inf, dtype=max_acc.dtype)
        sum_acc[...] = jnp.zeros(sum_acc.shape, dtype=sum_acc.dtype)

    w = w_ref[0].astype(jnp.float32)                     # (row_tile, n)
    grow = lax.broadcasted_iota(jnp.int32, (row_tile, n), 0) + r * row_tile
    col = lax.broadcasted_iota(jnp.int32, (row_tile, n), 1)
    diag = grow == col
    nw = jnp.where(diag, -w, w)                          # single select / elem

    valid = (grow < n) if has_partial else None          # padded rows of last tile

    def _fold(x, reducer):
        if fold8:
            # (row_tile//8, 8, n) leading-axis reduce == pure-VALU vreg folding.
            x3 = x.reshape(row_tile // _SUBLANES, _SUBLANES, n)
            return reducer(x3, axis=0)                   # (8, n)
        return reducer(x, axis=0, keepdims=True)         # rare: row_tile not /8

    if need_max:
        nw_m = jnp.where(valid, nw, -jnp.inf) if has_partial else nw
        max_acc[...] = jnp.maximum(max_acc[...], _fold(nw_m, jnp.max))
    if need_sum:
        nw_s = jnp.where(valid, nw, jnp.float32(0.0)) if has_partial else nw
        sum_acc[...] = sum_acc[...] + _fold(nw_s, jnp.sum)

    @pl.when(r == nr - 1)
    def _finalize():
        def _reduce(acc, reducer):
            # lanes first, then sublanes -> (1, 1); XLU touched once per batch.
            return reducer(reducer(acc[...], axis=1, keepdims=True),
                           axis=0, keepdims=True)
        if havesum and havemax:
            val = (_reduce(max_acc, jnp.max)
                   + jnp.float32(factor) * _reduce(sum_acc, jnp.sum))
        elif havesum:
            val = jnp.float32(factor) * _reduce(sum_acc, jnp.sum)
        else:
            val = _reduce(max_acc, jnp.max)
        # lane-dense per-batch output slab (unmasked vector stores).
        out_ref[...] = jnp.broadcast_to(val.reshape(1, 1, 1), out_ref.shape)


def _pick_row_tile(n, itemsize):
    # dtype-aware sublane packing: 8 (f32), 16 (bf16), 32 (int8/fp8).
    base = _SUBLANES * max(1, 4 // int(itemsize))
    if n * n * itemsize <= _TILE_TARGET_BYTES:
        return n                                          # whole (n, n) per step
    max_rows = (_TILE_TARGET_BYTES // (n * itemsize)) // base * base
    max_rows = int(max(base, min(max_rows, n // base * base)))
    if n % base == 0:
        # Prefer a tile that divides n: no partial-row masks in steady state.
        for cand in range(max_rows, base - 1, -base):
            if n % cand == 0:
                return cand
    return max_rows


def _cos_loss_tiled(w, factor, havesum, havemax, row_tile):
    B, N, _ = w.shape
    itemsize = int(jnp.dtype(w.dtype).itemsize)
    base = _SUBLANES * max(1, 4 // itemsize)
    if row_tile is None:
        row_tile = _pick_row_tile(N, itemsize)
    row_tile = int(min(row_tile, N))
    if row_tile != N and row_tile % base != 0:
        row_tile = max(base, row_tile // base * base)
    row_tile = int(min(row_tile, N))
    nr = int(pl.cdiv(N, row_tile))
    has_partial = (N % row_tile) != 0
    acc_rows = _SUBLANES if (row_tile % _SUBLANES) == 0 else 1

    kernel = functools.partial(
        _cos_loss_tiled_kernel, n=N, row_tile=row_tile, factor=factor,
        havesum=havesum, havemax=havemax, has_partial=has_partial)

    tile_bytes = row_tile * N * itemsize
    acc_bytes = 2 * acc_rows * _round_up(N, _LANES) * 4
    # double-buffered input tile + accumulators + headroom; fits v7x 64 MiB.
    vmem_limit = int(min(64 << 20,
                         max(16 << 20, 2 * tile_bytes + acc_bytes + (8 << 20))))

    cost = pl.CostEstimate(
        flops=4 * B * N * N, transcendentals=0,
        bytes_accessed=B * N * N * itemsize + B * _SUBLANES * _LANES * 4)

    per_batch = pl.pallas_call(
        kernel,
        out_shape=jax.ShapeDtypeStruct((B, _SUBLANES, _LANES), jnp.float32),
        grid_spec=pltpu.PrefetchScalarGridSpec(
            num_scalar_prefetch=0,
            grid=(B, nr),
            in_specs=[pl.BlockSpec((1, row_tile, N), lambda b, r: (b, r, 0))],
            out_specs=pl.BlockSpec((1, _SUBLANES, _LANES),
                                   lambda b, r: (b, 0, 0)),
            scratch_shapes=[pltpu.VMEM((acc_rows, N), jnp.float32),   # run max
                            pltpu.VMEM((acc_rows, N), jnp.float32)]), # run sum
        compiler_params=pltpu.CompilerParams(
            dimension_semantics=("parallel", "arbitrary"),
            vmem_limit_bytes=vmem_limit),
        cost_estimate=cost,
    )(w)
    # Tiny final mean over B in the wrapper keeps the batch grid axis
    # "parallel" so v7x can shard it across both TensorCores.
    return jnp.mean(per_batch[:, 0, 0])


# ---------------------------------------------------------------------------
# Public entry point.
# ---------------------------------------------------------------------------
def cos_loss(w, *, factor=6e-07, havesum=True, havemax=True, row_tile=None):
    """w: (B, N, N) -> scalar float32 loss (matches CosLoss.forward)."""
    B, N, M = w.shape
    assert N == M, f"CosLoss expects square trailing dims, got ({N}, {M})"
    if row_tile is None:
        padded_f32 = _round_up(B, _SUBLANES) * _round_up(N * N, _LANES) * 4
        if padded_f32 <= _FAST_PATH_F32_BYTES:
            return _cos_loss_small(w, factor, havesum, havemax)
    return _cos_loss_tiled(w, factor, havesum, havemax, row_tile)


def _reference(w, factor=6e-07, havesum=True, havemax=True):
    """Pure-JAX reference mirroring the PyTorch forward."""
    w = w.astype(jnp.float32)
    _, N, M = w.shape
    row = lax.broadcasted_iota(jnp.int32, (N, M), 0)
    col = lax.broadcasted_iota(jnp.int32, (N, M), 1)
    nw = jnp.where((row == col)[None], -w, w)
    tmp = jnp.max(jnp.max(nw, axis=1), axis=1)
    if havesum and havemax:
        tmp_all = tmp + factor * jnp.sum(jnp.sum(nw, axis=1), axis=1)
    elif havesum:
        tmp_all = factor * jnp.sum(jnp.sum(nw, axis=1), axis=1)
    else:
        tmp_all = tmp
    return jnp.mean(tmp_all)


if __name__ == "__main__":
    key = jax.random.PRNGKey(0)

    # Shipped module shape: batch=2, N=16 -> single-step lane-dense fast path.
    B, N = 2, 16
    w = jax.random.normal(key, (B, N, N), dtype=jnp.float32)
    loss = jax.block_until_ready(cos_loss(w))
    ref = jax.block_until_ready(_reference(w))
    assert jnp.allclose(loss, ref, atol=1e-5, rtol=1e-5), (loss, ref)

    # Flag variants (fast path branches).
    for hs, hm in ((False, True), (True, False)):
        l = jax.block_until_ready(cos_loss(w, havesum=hs, havemax=hm))
        r = jax.block_until_ready(_reference(w, havesum=hs, havemax=hm))
        assert jnp.allclose(l, r, atol=1e-5, rtol=1e-5), (hs, hm, l, r)

    # Force the tiled/pipelined path: multiple row tiles + partial last tile,
    # (8, N) vector accumulators, finalize reduce.
    B2, N2 = 2, 200
    w2 = jax.random.normal(jax.random.PRNGKey(1), (B2, N2, N2),
                           dtype=jnp.float32)
    loss2 = jax.block_until_ready(cos_loss(w2, row_tile=64))
    ref2 = jax.block_until_ready(_reference(w2))
    assert jnp.allclose(loss2, ref2, atol=1e-5, rtol=1e-5), (loss2, ref2)

    # Tiled path, row_tile == N not a multiple of 8 (fallback fold branch).
    B3, N3 = 3, 20
    w3 = jax.random.normal(jax.random.PRNGKey(2), (B3, N3, N3),
                           dtype=jnp.float32)
    loss3 = jax.block_until_ready(cos_loss(w3, row_tile=20))
    ref3 = jax.block_until_ready(_reference(w3))
    assert jnp.allclose(loss3, ref3, atol=1e-5, rtol=1e-5), (loss3, ref3)

    print("KERNEL_OK")
</pallas_src>

<mosaic_0001>
module attributes {stable_mosaic.version = 11 : i64} {
  func.func @_cos_loss_small_kernel(%arg0: i32, %arg1: memref<2x256xf32, #tpu.memory_space<vmem>>, %arg2: memref<1x256xf32, #tpu.memory_space<vmem>>, %arg3: memref<8x128xf32, #tpu.memory_space<vmem>>) attributes {dimension_semantics = [#tpu.dimension_semantics<arbitrary>], iteration_bounds = array<i64: 1>, scalar_prefetch = 0 : i64, scratch_operands = 0 : i64, tpu.core_type = #tpu.core_type<tc>, window_params = [{pipeline_mode = #tpu.pipeline_mode<synchronous>, transform_indices = @transform_0, window_bounds = array<i64: 2, 256>}, {pipeline_mode = #tpu.pipeline_mode<synchronous>, transform_indices = @transform_1, window_bounds = array<i64: 1, 256>}, {pipeline_mode = #tpu.pipeline_mode<synchronous>, transform_indices = @transform_2, window_bounds = array<i64: 8, 128>}]} {
    %c0 = arith.constant 0 : index
    %c0_0 = arith.constant 0 : index
    %0 = vector.load %arg1[%c0, %c0_0] : memref<2x256xf32, #tpu.memory_space<vmem>>, vector<2x256xf32>
    %c0_1 = arith.constant 0 : index
    %c0_2 = arith.constant 0 : index
    %1 = vector.load %arg2[%c0_1, %c0_2] : memref<1x256xf32, #tpu.memory_space<vmem>>, vector<1x256xf32>
    %2 = vector.broadcast %1 : vector<1x256xf32> to vector<2x256xf32>
    %3 = arith.mulf %0, %2 : vector<2x256xf32>
    %cst = arith.constant dense<0xFF800000> : vector<2xf32>
    %4 = vector.multi_reduction <maximumf>, %3, %cst [1] : vector<2x256xf32> to vector<2xf32>
    %5 = vector.shape_cast %4 : vector<2xf32> to vector<2x1xf32>
    %cst_3 = arith.constant dense<0.000000e+00> : vector<2xf32>
    %6 = vector.multi_reduction <add>, %3, %cst_3 [1] : vector<2x256xf32> to vector<2xf32>
    %7 = vector.shape_cast %6 : vector<2xf32> to vector<2x1xf32>
    %cst_4 = arith.constant 6.000000e-07 : f32
    %8 = vector.broadcast %cst_4 : f32 to vector<2x1xf32>
    %9 = arith.mulf %8, %7 : vector<2x1xf32>
    %10 = arith.addf %5, %9 : vector<2x1xf32>
    %cst_5 = arith.constant dense<0.000000e+00> : vector<1xf32>
    %11 = vector.multi_reduction <add>, %10, %cst_5 [0] : vector<2x1xf32> to vector<1xf32>
    %12 = vector.shape_cast %11 : vector<1xf32> to vector<1x1xf32>
    %cst_6 = arith.constant 5.000000e-01 : f32
    %13 = vector.broadcast %cst_6 : f32 to vector<1x1xf32>
    %14 = arith.mulf %12, %13 : vector<1x1xf32>
    %15 = vector.shape_cast %14 : vector<1x1xf32> to vector<1x1xf32>
    %16 = vector.broadcast %15 : vector<1x1xf32> to vector<8x128xf32>
    %c0_7 = arith.constant 0 : index
    %c0_8 = arith.constant 0 : index
    %17 = vector.load %arg3[%c0_7, %c0_8] : memref<8x128xf32, #tpu.memory_space<vmem>>, vector<8x128xf32>
    tpu.vector_store %arg3[%c0_7, %c0_8], %16 {strides = array<i32>} : memref<8x128xf32, #tpu.memory_space<vmem>>, vector<8x128xf32>,
    return
  }
  func.func @transform_0(%arg0: i32) -> (i32, i32) {
    %c0_i32 = arith.constant 0 : i32
    %c0_i32_0 = arith.constant 0 : i32
    %c0_i32_1 = arith.constant 0 : i32
    return %c0_i32, %c0_i32_0 : i32, i32
  }
  func.func @transform_1(%arg0: i32) -> (i32, i32) {
    %c0_i32 = arith.constant 0 : i32
    %c0_i32_0 = arith.constant 0 : i32
    %c0_i32_1 = arith.constant 0 : i32
    return %c0_i32, %c0_i32_0 : i32, i32
  }
  func.func @transform_2(%arg0: i32) -> (i32, i32) {
    %c0_i32 = arith.constant 0 : i32
    %c0_i32_0 = arith.constant 0 : i32
    %c0_i32_1 = arith.constant 0 : i32
    return %c0_i32, %c0_i32_0 : i32, i32
  }
}

</mosaic_0001>

<llo_original>
// kernel: tpu_custom_call.1
$region0: #{tpu_custom_call.1}
  #allocation0 [shape = 'u32[]', space=smem, size = 0x4, offset = 0x4, fixed_abs, tag = 'smem constant byte address 0x4 - core index']
  #allocation1 [shape = 'u32[144,128]{1,0:T(1,128)}', space=vmem, size = 0x12000, scoped, tag = 'internal scratch']
  %s0 = inlined_call_operand.hbm [shape: f32[2,256], index: 0, kind: input, shape index: {}]
  %s1 = inlined_call_operand.vmem [shape: f32[1,256], index: 1, kind: input, shape index: {}]
  %s2 = inlined_call_operand.hbm [shape: f32[8,128], index: 2, kind: output, shape index: {}]
  %s3 = sld [smem:[#allocation0]]
  $region22: #{tpu_custom_call.1} parent=0
    _
  %s5 = ssub.s32 1, %s3
  %s6 = scalar_select 0, %s5, %s3
  $region1: #{tpu_custom_call.1} parent=0
    #allocation2 [shape = 'u8[2048]{0}', space=vmem, size = 0x800, scoped, tag = 'input window, operand 0, single buffered']
    #allocation3 [shape = 's32[1]{0}', space=sflag, size = 0x4, scoped, tag = 'scoped memory for tpu_custom_call.1']
    #allocation4 [shape = 's32[1]{0}', space=sflag, size = 0x4, scoped, tag = 'scoped memory for tpu_custom_call.1']
    #allocation5 [shape = 'u8[4096]{0}', space=vmem, size = 0x1000, scoped, tag = 'output window, operand 0, single buffered']
    %7 = vsyncpa [#allocation3], 0
    %8 = vsyncpa [#allocation4], 0
    // Predicated region
    $region2: #{tpu_custom_call.1} parent=1 // pred_check
      _
    $region3: #{tpu_custom_call.1} parent=1 // pred_check_branch
      %10 = sbr.rel (0) target = $region5
    $region4: #{tpu_custom_call.1} parent=1 // pred_region
      %s12 = ssub.s32 64, 64
      %13 = vsyncadd [#allocation3], %s12
      %s15 = sshll.u32 [#allocation2], 4
      %s16 = int_to_ptr.vmem [resolvable:$true] %s15
      %18 = dma.hbm_to_vmem [thread:$0]  %s0, 64, %s16, [#allocation3]
    $region5: #{tpu_custom_call.1} parent=1 // pred_fallthru
      _
    // Predicated region
    $region6: #{tpu_custom_call.1} parent=1 // pred_check
      _
    $region7: #{tpu_custom_call.1} parent=1 // pred_check_branch
      %20 = sbr.rel (0) target = $region9
    $region8: #{tpu_custom_call.1} parent=1 // pred_region
      _
    $region9: #{tpu_custom_call.1} parent=1 // pred_fallthru
      _
    // Predicated region
    $region10: #{tpu_custom_call.1} parent=1 // pred_check
      _
    $region11: #{tpu_custom_call.1} parent=1 // pred_check_branch
      %22 = sbr.rel (0) target = $region13
    $region12: #{tpu_custom_call.1} parent=1 // pred_region
      %23 = dma.done [#allocation3], 64
    $region13: #{tpu_custom_call.1} parent=1 // pred_fallthru
      _
    %v24 = vld [vmem:[#allocation2] sm:$0xf]
    %v25 = vld [vmem:[%s1] sm:$0x3]
    %v27 = vlaneseq
    %v28 = vshrl.u32 %v27, 7
    %v29 = vsub.s32 0, %v28
    %v30 = vrot.slane %v25, %v29
    %v31 = vlaneseq
    %v32 = vshrl.u32 %v31, 7
    %v33 = vsub.s32 1, %v32
    %v34 = vrot.slane %v25, %v33
    %v35 = vcombine.low %v30, %v34
    %v37 = vunpack.c.l.s4 1983009808
    %v38 = vunpack.c.0.s8 %v37
    %v39 = vlaneseq
    %v40 = vshrl.u32 %v39, 7
    %v41 = vsub.s32 %v38, %v40
    %v42 = vrot.slane %v35, %v41
    %v44 = vmul.f32 %v24, %v42
    %v47 = vunpack.c.l.s4 1983009808
    %v48 = vunpack.c.0.s8 %v47
    %v49 = vlaneseq
    %v50 = vshrl.u32 %v49, 7
    %v51 = vsub.s32 %v48, %v50
    %v52 = vrot.slane %v44, %v51
    %v53 = vcombine.high %v52, %v52
    %vm56 = vcmask 1041408
    %v57 = vsel %vm56, %v52, -inf
    %v58 = vsel %vm56, %v53, -inf
    %v59 = vmax.f32 %v57, %v58
    %60 = vmax.xlane.f32.xlu0 %v59
    %v61 = vpop.xlane.xlu0 %60
    %v62 = vsel %vm56, %v52, 0.0
    %v63 = vsel %vm56, %v53, 0.0
    %v64 = vadd.f32 %v62, %v63
    %65 = vadd.xlane.f32.xlu0 %v64
    %v66 = vpop.xlane.xlu0 %65
    %v67 = vmul.f32 %v66, 6e-07
    %v68 = vadd.f32 %v61, %v67
    %v69 = vsel %vm56, %v68, 0.0
    %v70 = vrot.slane %v69, 4
    %v71 = vadd.f32 %v69, %v70
    %v72 = vrot.slane %v71, 2
    %v73 = vadd.f32 %v71, %v72
    %v74 = vrot.slane %v73, 1
    %v75 = vadd.f32 %v73, %v74
    %v76 = vmul.f32 %v75, 0.5
    %77 = vst [vmem:[#allocation5] sm:$0xff] %v76
    // Predicated region
    $region14: #{tpu_custom_call.1} parent=1 // pred_check
      _
    $region15: #{tpu_custom_call.1} parent=1 // pred_check_branch
      %79 = sbr.rel (0) target = $region17
    $region16: #{tpu_custom_call.1} parent=1 // pred_region
      %s81 = ssub.s32 128, 128
      %82 = vsyncadd [#allocation4], %s81
      %s84 = sshll.u32 [#allocation5], 4
      %s85 = int_to_ptr.vmem [resolvable:$true] %s84
      %87 = dma.vmem_to_hbm [thread:$0]  %s85, 128, %s2, [#allocation4]
    $region17: #{tpu_custom_call.1} parent=1 // pred_fallthru
      _
    // Predicated region
    $region18: #{tpu_custom_call.1} parent=1 // pred_check
      _
    $region19: #{tpu_custom_call.1} parent=1 // pred_check_branch
      %89 = sbr.rel (0) target = $region21
    $region20: #{tpu_custom_call.1} parent=1 // pred_region
      %90 = dma.done [#allocation4], 128
    $region21: #{tpu_custom_call.1} parent=1 // pred_fallthru
      _
    %91 = vsyncpa [#allocation3], 1
    %92 = vsyncpa [#allocation4], 1

</llo_original>
